<compile_context>
chip_gen: v6e
topology: v6e:2x2x1
jax: 0.10.0
libtpu: 0.0.40
codegen_flags: <defaults>
</compile_context>

<pallas_src>
import functools

import jax
import jax.numpy as jnp
from jax import lax
from jax.experimental import pallas as pl

N = 128            # number of graph nodes (multiple of the 128-lane width)
NEG = -1e30        # finite "minus infinity" sentinel (avoids inf/NaN propagation)
NEG_THRESH = -1e29


def _pick_topk(keys, acc_mask, iota, k_static):
    """k_static rounds of masked argmax over (1, N) keys.

    Each round adds the argmax position to acc_mask and kills its key so it
    cannot be re-picked (== sampling without replacement / Gumbel-top-k).
    Picks whose key is still at the NEG sentinel are suppressed, so fewer than
    k_static picks happen when not enough eligible entries exist.
    """
    n = keys.shape[-1]
    for _ in range(k_static):
        m = jnp.max(keys)
        idx = jnp.min(jnp.where(keys >= m, iota, n))
        pick = (iota == idx) & (m > NEG_THRESH)
        acc_mask = jnp.where(pick, 1.0, acc_mask)
        keys = jnp.where(pick, NEG, keys)
    return keys, acc_mask


def _make_kernel(center_budget, nei_budget, n):
    """Build the fused sampler kernel (budgets baked statically)."""

    def kernel(a_ref, valid_ref, unif_ref, gumb_ref, out_ref):
        a = a_ref[...]                                       # (N, N) f32
        iota = lax.broadcasted_iota(jnp.int32, (1, n), 1)    # lane indices

        # ---- degree log-probs (in-degree = column sum), zero-total guard ----
        deg = jnp.sum(a, axis=0, keepdims=True)              # (1, N)
        total = jnp.sum(deg)
        total = jnp.where(total > 0.0, total, 1.0)
        prob = deg / total
        logp = jnp.where(prob > 0.0,
                         jnp.log(jnp.where(prob > 0.0, prob, 1.0)),
                         NEG)

        # ---- center-node sampling: uniform-key top-k == random.sample ----
        ckeys = jnp.where(valid_ref[...] > 0.0, unif_ref[...], NEG)
        center = jnp.zeros((1, n), jnp.float32)
        _, center = _pick_topk(ckeys, center, iota, center_budget)

        # ---- neighbor discovery (frontier fixed to centers, as in the ref) ----
        # hit[u] = sum_v center[v] * A[u, v]  -> u is an in-edge source of a
        # selected v.  LHS broadcast to 8 sublanes = full MXU sublane tile; no
        # external A^T materialization (contraction on rhs dim 1).
        sel8 = jnp.broadcast_to(center, (8, n))
        hit8 = lax.dot_general(sel8, a, (((1,), (1,)), ((), ())),
                               preferred_element_type=jnp.float32)   # (8, N)
        hit = hit8[0:1, :]

        # ---- per-hop multinomial-without-replacement via Gumbel top-k ----
        ret = center
        for hop, b in enumerate(nei_budget):
            if b == 0:
                continue
            eligible = (hit > 0.0) & (ret == 0.0)
            keys = jnp.where(eligible, logp + gumb_ref[hop:hop + 1, :], NEG)
            _, ret = _pick_topk(keys, ret, iota, b)

        out_ref[...] = jnp.concatenate([center, ret], axis=0)   # (2, N)

    return kernel


@functools.partial(jax.jit, static_argnames=("center_budget", "nei_budget"))
def _fused_sample(adj, valid, unif, gumb, *, center_budget, nei_budget):
    n = adj.shape[0]
    kernel = _make_kernel(center_budget, nei_budget, n)
    return pl.pallas_call(
        kernel,
        out_shape=jax.ShapeDtypeStruct((2, n), jnp.float32),
    )(adj, valid, unif, gumb)


class DegreeBasedSamplerPallas:
    """Pallas port of DegreeBasedSampler.forward (one kernel launch total)."""

    def forward(self, adj, center_node_budget, nei_budget, ids_per_cls, seed=0,
                max_ratio_per_cls=1.0):
        n = adj.shape[0]
        n_ids = len(ids_per_cls)
        budget_ = min(int(center_node_budget), int(max_ratio_per_cls * n_ids))
        nei_budget = tuple(int(b) for b in nei_budget)
        n_hops = max(len(nei_budget), 1)

        valid = jnp.zeros((1, n), jnp.float32).at[
            0, jnp.asarray(ids_per_cls, dtype=jnp.int32)].set(1.0)

        key = jax.random.PRNGKey(seed)
        k_u, k_g = jax.random.split(key)
        unif = jax.random.uniform(k_u, (1, n), dtype=jnp.float32)
        gumb = jax.random.gumbel(k_g, (n_hops, n), dtype=jnp.float32)

        out = _fused_sample(adj.astype(jnp.float32), valid, unif, gumb,
                            center_budget=budget_, nei_budget=nei_budget)
        masks = jax.device_get(jax.block_until_ready(out))

        center_nodes = [int(i) for i in range(n) if masks[0, i] > 0.5]
        all_nodes = [int(i) for i in range(n) if masks[1, i] > 0.5]
        return center_nodes, all_nodes


if __name__ == "__main__":
    key = jax.random.PRNGKey(0)
    # deterministic synthetic directed graph on N nodes
    adj = jax.random.bernoulli(key, 0.05, (N, N)).astype(jnp.float32)
    adj = adj * (1.0 - jnp.eye(N, dtype=jnp.float32))   # no self loops

    ids_per_cls = list(range(32))     # candidate center nodes of one class
    center_node_budget = 5
    nei_budget = [4, 3]

    sampler = DegreeBasedSamplerPallas()
    center_nodes, all_nodes = sampler.forward(
        adj, center_node_budget, nei_budget, ids_per_cls, seed=0)

    # basic sanity: centers are a subset of all selected nodes, budgets respected
    assert len(center_nodes) == center_node_budget
    assert set(center_nodes).issubset(set(all_nodes))
    assert len(all_nodes) <= center_node_budget + sum(nei_budget)

    print("KERNEL_OK")
</pallas_src>

<mosaic_0001>
module attributes {stable_mosaic.version = 11 : i64} {
  func.func @kernel(%arg0: memref<128x128xf32, #tpu.memory_space<vmem>>, %arg1: memref<1x128xf32, #tpu.memory_space<vmem>>, %arg2: memref<1x128xf32, #tpu.memory_space<vmem>>, %arg3: memref<2x128xf32, #tpu.memory_space<vmem>>, %arg4: memref<2x128xf32, #tpu.memory_space<vmem>>) attributes {dimension_semantics = [], scalar_prefetch = 0 : i64, scratch_operands = 0 : i64, tpu.core_type = #tpu.core_type<tc>} {
    %c0 = arith.constant 0 : index
    %c0_0 = arith.constant 0 : index
    %0 = vector.load %arg0[%c0, %c0_0] : memref<128x128xf32, #tpu.memory_space<vmem>>, vector<128x128xf32>
    %1 = tpu.iota {dimensions = array<i32: 1>} : vector<1x128xi32>
    %cst = arith.constant dense<0.000000e+00> : vector<128xf32>
    %2 = vector.multi_reduction <add>, %0, %cst [0] : vector<128x128xf32> to vector<128xf32>
    %3 = vector.shape_cast %2 : vector<128xf32> to vector<1x128xf32>
    %4 = vector.shape_cast %3 : vector<1x128xf32> to vector<1x1x128xf32>
    %cst_1 = arith.constant dense<0.000000e+00> : vector<1xf32>
    %5 = vector.multi_reduction <add>, %4, %cst_1 [1, 2] : vector<1x1x128xf32> to vector<1xf32>
    %6 = vector.shape_cast %5 : vector<1xf32> to vector<1x1x1xf32>
    %7 = vector.extract %6[0, 0, 0] : f32 from vector<1x1x1xf32>
    %cst_2 = arith.constant 0.000000e+00 : f32
    %8 = arith.cmpf ogt, %7, %cst_2 : f32
    %cst_3 = arith.constant 1.000000e+00 : f32
    %9 = arith.select %8, %7, %cst_3 : f32
    %10 = vector.broadcast %9 : f32 to vector<1x128xf32>
    %11 = arith.divf %3, %10 : vector<1x128xf32>
    %cst_4 = arith.constant 0.000000e+00 : f32
    %12 = vector.broadcast %cst_4 : f32 to vector<1x128xf32>
    %13 = arith.cmpf ogt, %11, %12 : vector<1x128xf32>
    %cst_5 = arith.constant 0.000000e+00 : f32
    %14 = vector.broadcast %cst_5 : f32 to vector<1x128xf32>
    %15 = arith.cmpf ogt, %11, %14 : vector<1x128xf32>
    %cst_6 = arith.constant 1.000000e+00 : f32
    %16 = vector.broadcast %cst_6 : f32 to vector<1x128xf32>
    %17 = arith.select %15, %11, %16 : vector<1x128xi1>, vector<1x128xf32>
    %18 = math.log %17 : vector<1x128xf32>
    %cst_7 = arith.constant -1.000000e+30 : f32
    %19 = vector.broadcast %cst_7 : f32 to vector<1x128xf32>
    %20 = arith.select %13, %18, %19 : vector<1x128xi1>, vector<1x128xf32>
    %c0_8 = arith.constant 0 : index
    %c0_9 = arith.constant 0 : index
    %21 = vector.load %arg1[%c0_8, %c0_9] : memref<1x128xf32, #tpu.memory_space<vmem>>, vector<1x128xf32>
    %cst_10 = arith.constant 0.000000e+00 : f32
    %22 = vector.broadcast %cst_10 : f32 to vector<1x128xf32>
    %23 = arith.cmpf ogt, %21, %22 : vector<1x128xf32>
    %c0_11 = arith.constant 0 : index
    %c0_12 = arith.constant 0 : index
    %24 = vector.load %arg2[%c0_11, %c0_12] : memref<1x128xf32, #tpu.memory_space<vmem>>, vector<1x128xf32>
    %cst_13 = arith.constant -1.000000e+30 : f32
    %25 = vector.broadcast %cst_13 : f32 to vector<1x128xf32>
    %26 = arith.select %23, %24, %25 : vector<1x128xi1>, vector<1x128xf32>
    %cst_14 = arith.constant 0.000000e+00 : f32
    %27 = vector.broadcast %cst_14 : f32 to vector<1x128xf32>
    %28 = vector.shape_cast %26 : vector<1x128xf32> to vector<1x1x128xf32>
    %cst_15 = arith.constant dense<0xFF800000> : vector<1xf32>
    %29 = vector.multi_reduction <maximumf>, %28, %cst_15 [1, 2] : vector<1x1x128xf32> to vector<1xf32>
    %30 = vector.shape_cast %29 : vector<1xf32> to vector<1x1x1xf32>
    %31 = vector.extract %30[0, 0, 0] : f32 from vector<1x1x1xf32>
    %32 = vector.broadcast %31 : f32 to vector<1x128xf32>
    %33 = arith.cmpf oge, %26, %32 : vector<1x128xf32>
    %c128_i32 = arith.constant 128 : i32
    %34 = vector.broadcast %c128_i32 : i32 to vector<1x128xi32>
    %35 = arith.select %33, %1, %34 : vector<1x128xi1>, vector<1x128xi32>
    %36 = vector.shape_cast %35 : vector<1x128xi32> to vector<1x1x128xi32>
    %cst_16 = arith.constant dense<2147483647> : vector<1xi32>
    %37 = vector.multi_reduction <minsi>, %36, %cst_16 [1, 2] : vector<1x1x128xi32> to vector<1xi32>
    %38 = vector.shape_cast %37 : vector<1xi32> to vector<1x1x1xi32>
    %39 = vector.extract %38[0, 0, 0] : i32 from vector<1x1x1xi32>
    %40 = vector.broadcast %39 : i32 to vector<1x128xi32>
    %41 = arith.cmpi eq, %1, %40 : vector<1x128xi32>
    %cst_17 = arith.constant -1.000000e+29 : f32
    %42 = arith.cmpf ogt, %31, %cst_17 : f32
    %43 = vector.broadcast %42 : i1 to vector<1x128xi1>
    %44 = arith.andi %41, %43 : vector<1x128xi1>
    %cst_18 = arith.constant 1.000000e+00 : f32
    %45 = vector.broadcast %cst_18 : f32 to vector<1x128xf32>
    %46 = arith.select %44, %45, %27 : vector<1x128xi1>, vector<1x128xf32>
    %cst_19 = arith.constant -1.000000e+30 : f32
    %47 = vector.broadcast %cst_19 : f32 to vector<1x128xf32>
    %48 = arith.select %44, %47, %26 : vector<1x128xi1>, vector<1x128xf32>
    %49 = vector.shape_cast %48 : vector<1x128xf32> to vector<1x1x128xf32>
    %cst_20 = arith.constant dense<0xFF800000> : vector<1xf32>
    %50 = vector.multi_reduction <maximumf>, %49, %cst_20 [1, 2] : vector<1x1x128xf32> to vector<1xf32>
    %51 = vector.shape_cast %50 : vector<1xf32> to vector<1x1x1xf32>
    %52 = vector.extract %51[0, 0, 0] : f32 from vector<1x1x1xf32>
    %53 = vector.broadcast %52 : f32 to vector<1x128xf32>
    %54 = arith.cmpf oge, %48, %53 : vector<1x128xf32>
    %c128_i32_21 = arith.constant 128 : i32
    %55 = vector.broadcast %c128_i32_21 : i32 to vector<1x128xi32>
    %56 = arith.select %54, %1, %55 : vector<1x128xi1>, vector<1x128xi32>
    %57 = vector.shape_cast %56 : vector<1x128xi32> to vector<1x1x128xi32>
    %cst_22 = arith.constant dense<2147483647> : vector<1xi32>
    %58 = vector.multi_reduction <minsi>, %57, %cst_22 [1, 2] : vector<1x1x128xi32> to vector<1xi32>
    %59 = vector.shape_cast %58 : vector<1xi32> to vector<1x1x1xi32>
    %60 = vector.extract %59[0, 0, 0] : i32 from vector<1x1x1xi32>
    %61 = vector.broadcast %60 : i32 to vector<1x128xi32>
    %62 = arith.cmpi eq, %1, %61 : vector<1x128xi32>
    %cst_23 = arith.constant -1.000000e+29 : f32
    %63 = arith.cmpf ogt, %52, %cst_23 : f32
    %64 = vector.broadcast %63 : i1 to vector<1x128xi1>
    %65 = arith.andi %62, %64 : vector<1x128xi1>
    %cst_24 = arith.constant 1.000000e+00 : f32
    %66 = vector.broadcast %cst_24 : f32 to vector<1x128xf32>
    %67 = arith.select %65, %66, %46 : vector<1x128xi1>, vector<1x128xf32>
    %cst_25 = arith.constant -1.000000e+30 : f32
    %68 = vector.broadcast %cst_25 : f32 to vector<1x128xf32>
    %69 = arith.select %65, %68, %48 : vector<1x128xi1>, vector<1x128xf32>
    %70 = vector.shape_cast %69 : vector<1x128xf32> to vector<1x1x128xf32>
    %cst_26 = arith.constant dense<0xFF800000> : vector<1xf32>
    %71 = vector.multi_reduction <maximumf>, %70, %cst_26 [1, 2] : vector<1x1x128xf32> to vector<1xf32>
    %72 = vector.shape_cast %71 : vector<1xf32> to vector<1x1x1xf32>
    %73 = vector.extract %72[0, 0, 0] : f32 from vector<1x1x1xf32>
    %74 = vector.broadcast %73 : f32 to vector<1x128xf32>
    %75 = arith.cmpf oge, %69, %74 : vector<1x128xf32>
    %c128_i32_27 = arith.constant 128 : i32
    %76 = vector.broadcast %c128_i32_27 : i32 to vector<1x128xi32>
    %77 = arith.select %75, %1, %76 : vector<1x128xi1>, vector<1x128xi32>
    %78 = vector.shape_cast %77 : vector<1x128xi32> to vector<1x1x128xi32>
    %cst_28 = arith.constant dense<2147483647> : vector<1xi32>
    %79 = vector.multi_reduction <minsi>, %78, %cst_28 [1, 2] : vector<1x1x128xi32> to vector<1xi32>
    %80 = vector.shape_cast %79 : vector<1xi32> to vector<1x1x1xi32>
    %81 = vector.extract %80[0, 0, 0] : i32 from vector<1x1x1xi32>
    %82 = vector.broadcast %81 : i32 to vector<1x128xi32>
    %83 = arith.cmpi eq, %1, %82 : vector<1x128xi32>
    %cst_29 = arith.constant -1.000000e+29 : f32
    %84 = arith.cmpf ogt, %73, %cst_29 : f32
    %85 = vector.broadcast %84 : i1 to vector<1x128xi1>
    %86 = arith.andi %83, %85 : vector<1x128xi1>
    %cst_30 = arith.constant 1.000000e+00 : f32
    %87 = vector.broadcast %cst_30 : f32 to vector<1x128xf32>
    %88 = arith.select %86, %87, %67 : vector<1x128xi1>, vector<1x128xf32>
    %cst_31 = arith.constant -1.000000e+30 : f32
    %89 = vector.broadcast %cst_31 : f32 to vector<1x128xf32>
    %90 = arith.select %86, %89, %69 : vector<1x128xi1>, vector<1x128xf32>
    %91 = vector.shape_cast %90 : vector<1x128xf32> to vector<1x1x128xf32>
    %cst_32 = arith.constant dense<0xFF800000> : vector<1xf32>
    %92 = vector.multi_reduction <maximumf>, %91, %cst_32 [1, 2] : vector<1x1x128xf32> to vector<1xf32>
    %93 = vector.shape_cast %92 : vector<1xf32> to vector<1x1x1xf32>
    %94 = vector.extract %93[0, 0, 0] : f32 from vector<1x1x1xf32>
    %95 = vector.broadcast %94 : f32 to vector<1x128xf32>
    %96 = arith.cmpf oge, %90, %95 : vector<1x128xf32>
    %c128_i32_33 = arith.constant 128 : i32
    %97 = vector.broadcast %c128_i32_33 : i32 to vector<1x128xi32>
    %98 = arith.select %96, %1, %97 : vector<1x128xi1>, vector<1x128xi32>
    %99 = vector.shape_cast %98 : vector<1x128xi32> to vector<1x1x128xi32>
    %cst_34 = arith.constant dense<2147483647> : vector<1xi32>
    %100 = vector.multi_reduction <minsi>, %99, %cst_34 [1, 2] : vector<1x1x128xi32> to vector<1xi32>
    %101 = vector.shape_cast %100 : vector<1xi32> to vector<1x1x1xi32>
    %102 = vector.extract %101[0, 0, 0] : i32 from vector<1x1x1xi32>
    %103 = vector.broadcast %102 : i32 to vector<1x128xi32>
    %104 = arith.cmpi eq, %1, %103 : vector<1x128xi32>
    %cst_35 = arith.constant -1.000000e+29 : f32
    %105 = arith.cmpf ogt, %94, %cst_35 : f32
    %106 = vector.broadcast %105 : i1 to vector<1x128xi1>
    %107 = arith.andi %104, %106 : vector<1x128xi1>
    %cst_36 = arith.constant 1.000000e+00 : f32
    %108 = vector.broadcast %cst_36 : f32 to vector<1x128xf32>
    %109 = arith.select %107, %108, %88 : vector<1x128xi1>, vector<1x128xf32>
    %cst_37 = arith.constant -1.000000e+30 : f32
    %110 = vector.broadcast %cst_37 : f32 to vector<1x128xf32>
    %111 = arith.select %107, %110, %90 : vector<1x128xi1>, vector<1x128xf32>
    %112 = vector.shape_cast %111 : vector<1x128xf32> to vector<1x1x128xf32>
    %cst_38 = arith.constant dense<0xFF800000> : vector<1xf32>
    %113 = vector.multi_reduction <maximumf>, %112, %cst_38 [1, 2] : vector<1x1x128xf32> to vector<1xf32>
    %114 = vector.shape_cast %113 : vector<1xf32> to vector<1x1x1xf32>
    %115 = vector.extract %114[0, 0, 0] : f32 from vector<1x1x1xf32>
    %116 = vector.broadcast %115 : f32 to vector<1x128xf32>
    %117 = arith.cmpf oge, %111, %116 : vector<1x128xf32>
    %c128_i32_39 = arith.constant 128 : i32
    %118 = vector.broadcast %c128_i32_39 : i32 to vector<1x128xi32>
    %119 = arith.select %117, %1, %118 : vector<1x128xi1>, vector<1x128xi32>
    %120 = vector.shape_cast %119 : vector<1x128xi32> to vector<1x1x128xi32>
    %cst_40 = arith.constant dense<2147483647> : vector<1xi32>
    %121 = vector.multi_reduction <minsi>, %120, %cst_40 [1, 2] : vector<1x1x128xi32> to vector<1xi32>
    %122 = vector.shape_cast %121 : vector<1xi32> to vector<1x1x1xi32>
    %123 = vector.extract %122[0, 0, 0] : i32 from vector<1x1x1xi32>
    %124 = vector.broadcast %123 : i32 to vector<1x128xi32>
    %125 = arith.cmpi eq, %1, %124 : vector<1x128xi32>
    %cst_41 = arith.constant -1.000000e+29 : f32
    %126 = arith.cmpf ogt, %115, %cst_41 : f32
    %127 = vector.broadcast %126 : i1 to vector<1x128xi1>
    %128 = arith.andi %125, %127 : vector<1x128xi1>
    %cst_42 = arith.constant 1.000000e+00 : f32
    %129 = vector.broadcast %cst_42 : f32 to vector<1x128xf32>
    %130 = arith.select %128, %129, %109 : vector<1x128xi1>, vector<1x128xf32>
    %131 = vector.shape_cast %130 : vector<1x128xf32> to vector<1x128xf32>
    %132 = vector.broadcast %131 : vector<1x128xf32> to vector<8x128xf32>
    %cst_43 = arith.constant dense<0.000000e+00> : vector<8x128xf32>
    %133 = tpu.matmul %132, %0, %cst_43 {dimension_numbers = #tpu.dot_dimension_numbers<[1], [1], [0], [0], [0, 0, 1, 0], [], []>} : vector<8x128xf32>, vector<128x128xf32>, vector<8x128xf32> -> vector<8x128xf32>
    %134 = vector.extract_strided_slice %133 {offsets = [0, 0], sizes = [1, 128], strides = [1, 1]} : vector<8x128xf32> to vector<1x128xf32>
    %cst_44 = arith.constant 0.000000e+00 : f32
    %135 = vector.broadcast %cst_44 : f32 to vector<1x128xf32>
    %136 = arith.cmpf ogt, %134, %135 : vector<1x128xf32>
    %cst_45 = arith.constant 0.000000e+00 : f32
    %137 = vector.broadcast %cst_45 : f32 to vector<1x128xf32>
    %138 = arith.cmpf oeq, %130, %137 : vector<1x128xf32>
    %139 = arith.andi %136, %138 : vector<1x128xi1>
    %c0_46 = arith.constant 0 : index
    %c0_47 = arith.constant 0 : index
    %140 = vector.load %arg3[%c0_46, %c0_47] : memref<2x128xf32, #tpu.memory_space<vmem>>, vector<1x128xf32>
    %141 = arith.addf %20, %140 : vector<1x128xf32>
    %cst_48 = arith.constant -1.000000e+30 : f32
    %142 = vector.broadcast %cst_48 : f32 to vector<1x128xf32>
    %143 = arith.select %139, %141, %142 : vector<1x128xi1>, vector<1x128xf32>
    %144 = vector.shape_cast %143 : vector<1x128xf32> to vector<1x1x128xf32>
    %cst_49 = arith.constant dense<0xFF800000> : vector<1xf32>
    %145 = vector.multi_reduction <maximumf>, %144, %cst_49 [1, 2] : vector<1x1x128xf32> to vector<1xf32>
    %146 = vector.shape_cast %145 : vector<1xf32> to vector<1x1x1xf32>
    %147 = vector.extract %146[0, 0, 0] : f32 from vector<1x1x1xf32>
    %148 = vector.broadcast %147 : f32 to vector<1x128xf32>
    %149 = arith.cmpf oge, %143, %148 : vector<1x128xf32>
    %c128_i32_50 = arith.constant 128 : i32
    %150 = vector.broadcast %c128_i32_50 : i32 to vector<1x128xi32>
    %151 = arith.select %149, %1, %150 : vector<1x128xi1>, vector<1x128xi32>
    %152 = vector.shape_cast %151 : vector<1x128xi32> to vector<1x1x128xi32>
    %cst_51 = arith.constant dense<2147483647> : vector<1xi32>
    %153 = vector.multi_reduction <minsi>, %152, %cst_51 [1, 2] : vector<1x1x128xi32> to vector<1xi32>
    %154 = vector.shape_cast %153 : vector<1xi32> to vector<1x1x1xi32>
    %155 = vector.extract %154[0, 0, 0] : i32 from vector<1x1x1xi32>
    %156 = vector.broadcast %155 : i32 to vector<1x128xi32>
    %157 = arith.cmpi eq, %1, %156 : vector<1x128xi32>
    %cst_52 = arith.constant -1.000000e+29 : f32
    %158 = arith.cmpf ogt, %147, %cst_52 : f32
    %159 = vector.broadcast %158 : i1 to vector<1x128xi1>
    %160 = arith.andi %157, %159 : vector<1x128xi1>
    %cst_53 = arith.constant 1.000000e+00 : f32
    %161 = vector.broadcast %cst_53 : f32 to vector<1x128xf32>
    %162 = arith.select %160, %161, %130 : vector<1x128xi1>, vector<1x128xf32>
    %cst_54 = arith.constant -1.000000e+30 : f32
    %163 = vector.broadcast %cst_54 : f32 to vector<1x128xf32>
    %164 = arith.select %160, %163, %143 : vector<1x128xi1>, vector<1x128xf32>
    %165 = vector.shape_cast %164 : vector<1x128xf32> to vector<1x1x128xf32>
    %cst_55 = arith.constant dense<0xFF800000> : vector<1xf32>
    %166 = vector.multi_reduction <maximumf>, %165, %cst_55 [1, 2] : vector<1x1x128xf32> to vector<1xf32>
    %167 = vector.shape_cast %166 : vector<1xf32> to vector<1x1x1xf32>
    %168 = vector.extract %167[0, 0, 0] : f32 from vector<1x1x1xf32>
    %169 = vector.broadcast %168 : f32 to vector<1x128xf32>
    %170 = arith.cmpf oge, %164, %169 : vector<1x128xf32>
    %c128_i32_56 = arith.constant 128 : i32
    %171 = vector.broadcast %c128_i32_56 : i32 to vector<1x128xi32>
    %172 = arith.select %170, %1, %171 : vector<1x128xi1>, vector<1x128xi32>
    %173 = vector.shape_cast %172 : vector<1x128xi32> to vector<1x1x128xi32>
    %cst_57 = arith.constant dense<2147483647> : vector<1xi32>
    %174 = vector.multi_reduction <minsi>, %173, %cst_57 [1, 2] : vector<1x1x128xi32> to vector<1xi32>
    %175 = vector.shape_cast %174 : vector<1xi32> to vector<1x1x1xi32>
    %176 = vector.extract %175[0, 0, 0] : i32 from vector<1x1x1xi32>
    %177 = vector.broadcast %176 : i32 to vector<1x128xi32>
    %178 = arith.cmpi eq, %1, %177 : vector<1x128xi32>
    %cst_58 = arith.constant -1.000000e+29 : f32
    %179 = arith.cmpf ogt, %168, %cst_58 : f32
    %180 = vector.broadcast %179 : i1 to vector<1x128xi1>
    %181 = arith.andi %178, %180 : vector<1x128xi1>
    %cst_59 = arith.constant 1.000000e+00 : f32
    %182 = vector.broadcast %cst_59 : f32 to vector<1x128xf32>
    %183 = arith.select %181, %182, %162 : vector<1x128xi1>, vector<1x128xf32>
    %cst_60 = arith.constant -1.000000e+30 : f32
    %184 = vector.broadcast %cst_60 : f32 to vector<1x128xf32>
    %185 = arith.select %181, %184, %164 : vector<1x128xi1>, vector<1x128xf32>
    %186 = vector.shape_cast %185 : vector<1x128xf32> to vector<1x1x128xf32>
    %cst_61 = arith.constant dense<0xFF800000> : vector<1xf32>
    %187 = vector.multi_reduction <maximumf>, %186, %cst_61 [1, 2] : vector<1x1x128xf32> to vector<1xf32>
    %188 = vector.shape_cast %187 : vector<1xf32> to vector<1x1x1xf32>
    %189 = vector.extract %188[0, 0, 0] : f32 from vector<1x1x1xf32>
    %190 = vector.broadcast %189 : f32 to vector<1x128xf32>
    %191 = arith.cmpf oge, %185, %190 : vector<1x128xf32>
    %c128_i32_62 = arith.constant 128 : i32
    %192 = vector.broadcast %c128_i32_62 : i32 to vector<1x128xi32>
    %193 = arith.select %191, %1, %192 : vector<1x128xi1>, vector<1x128xi32>
    %194 = vector.shape_cast %193 : vector<1x128xi32> to vector<1x1x128xi32>
    %cst_63 = arith.constant dense<2147483647> : vector<1xi32>
    %195 = vector.multi_reduction <minsi>, %194, %cst_63 [1, 2] : vector<1x1x128xi32> to vector<1xi32>
    %196 = vector.shape_cast %195 : vector<1xi32> to vector<1x1x1xi32>
    %197 = vector.extract %196[0, 0, 0] : i32 from vector<1x1x1xi32>
    %198 = vector.broadcast %197 : i32 to vector<1x128xi32>
    %199 = arith.cmpi eq, %1, %198 : vector<1x128xi32>
    %cst_64 = arith.constant -1.000000e+29 : f32
    %200 = arith.cmpf ogt, %189, %cst_64 : f32
    %201 = vector.broadcast %200 : i1 to vector<1x128xi1>
    %202 = arith.andi %199, %201 : vector<1x128xi1>
    %cst_65 = arith.constant 1.000000e+00 : f32
    %203 = vector.broadcast %cst_65 : f32 to vector<1x128xf32>
    %204 = arith.select %202, %203, %183 : vector<1x128xi1>, vector<1x128xf32>
    %cst_66 = arith.constant -1.000000e+30 : f32
    %205 = vector.broadcast %cst_66 : f32 to vector<1x128xf32>
    %206 = arith.select %202, %205, %185 : vector<1x128xi1>, vector<1x128xf32>
    %207 = vector.shape_cast %206 : vector<1x128xf32> to vector<1x1x128xf32>
    %cst_67 = arith.constant dense<0xFF800000> : vector<1xf32>
    %208 = vector.multi_reduction <maximumf>, %207, %cst_67 [1, 2] : vector<1x1x128xf32> to vector<1xf32>
    %209 = vector.shape_cast %208 : vector<1xf32> to vector<1x1x1xf32>
    %210 = vector.extract %209[0, 0, 0] : f32 from vector<1x1x1xf32>
    %211 = vector.broadcast %210 : f32 to vector<1x128xf32>
    %212 = arith.cmpf oge, %206, %211 : vector<1x128xf32>
    %c128_i32_68 = arith.constant 128 : i32
    %213 = vector.broadcast %c128_i32_68 : i32 to vector<1x128xi32>
    %214 = arith.select %212, %1, %213 : vector<1x128xi1>, vector<1x128xi32>
    %215 = vector.shape_cast %214 : vector<1x128xi32> to vector<1x1x128xi32>
    %cst_69 = arith.constant dense<2147483647> : vector<1xi32>
    %216 = vector.multi_reduction <minsi>, %215, %cst_69 [1, 2] : vector<1x1x128xi32> to vector<1xi32>
    %217 = vector.shape_cast %216 : vector<1xi32> to vector<1x1x1xi32>
    %218 = vector.extract %217[0, 0, 0] : i32 from vector<1x1x1xi32>
    %219 = vector.broadcast %218 : i32 to vector<1x128xi32>
    %220 = arith.cmpi eq, %1, %219 : vector<1x128xi32>
    %cst_70 = arith.constant -1.000000e+29 : f32
    %221 = arith.cmpf ogt, %210, %cst_70 : f32
    %222 = vector.broadcast %221 : i1 to vector<1x128xi1>
    %223 = arith.andi %220, %222 : vector<1x128xi1>
    %cst_71 = arith.constant 1.000000e+00 : f32
    %224 = vector.broadcast %cst_71 : f32 to vector<1x128xf32>
    %225 = arith.select %223, %224, %204 : vector<1x128xi1>, vector<1x128xf32>
    %cst_72 = arith.constant 0.000000e+00 : f32
    %226 = vector.broadcast %cst_72 : f32 to vector<1x128xf32>
    %227 = arith.cmpf ogt, %134, %226 : vector<1x128xf32>
    %cst_73 = arith.constant 0.000000e+00 : f32
    %228 = vector.broadcast %cst_73 : f32 to vector<1x128xf32>
    %229 = arith.cmpf oeq, %225, %228 : vector<1x128xf32>
    %230 = arith.andi %227, %229 : vector<1x128xi1>
    %c1 = arith.constant 1 : index
    %c0_74 = arith.constant 0 : index
    %231 = vector.load %arg3[%c1, %c0_74] : memref<2x128xf32, #tpu.memory_space<vmem>>, vector<1x128xf32>
    %232 = arith.addf %20, %231 : vector<1x128xf32>
    %cst_75 = arith.constant -1.000000e+30 : f32
    %233 = vector.broadcast %cst_75 : f32 to vector<1x128xf32>
    %234 = arith.select %230, %232, %233 : vector<1x128xi1>, vector<1x128xf32>
    %235 = vector.shape_cast %234 : vector<1x128xf32> to vector<1x1x128xf32>
    %cst_76 = arith.constant dense<0xFF800000> : vector<1xf32>
    %236 = vector.multi_reduction <maximumf>, %235, %cst_76 [1, 2] : vector<1x1x128xf32> to vector<1xf32>
    %237 = vector.shape_cast %236 : vector<1xf32> to vector<1x1x1xf32>
    %238 = vector.extract %237[0, 0, 0] : f32 from vector<1x1x1xf32>
    %239 = vector.broadcast %238 : f32 to vector<1x128xf32>
    %240 = arith.cmpf oge, %234, %239 : vector<1x128xf32>
    %c128_i32_77 = arith.constant 128 : i32
    %241 = vector.broadcast %c128_i32_77 : i32 to vector<1x128xi32>
    %242 = arith.select %240, %1, %241 : vector<1x128xi1>, vector<1x128xi32>
    %243 = vector.shape_cast %242 : vector<1x128xi32> to vector<1x1x128xi32>
    %cst_78 = arith.constant dense<2147483647> : vector<1xi32>
    %244 = vector.multi_reduction <minsi>, %243, %cst_78 [1, 2] : vector<1x1x128xi32> to vector<1xi32>
    %245 = vector.shape_cast %244 : vector<1xi32> to vector<1x1x1xi32>
    %246 = vector.extract %245[0, 0, 0] : i32 from vector<1x1x1xi32>
    %247 = vector.broadcast %246 : i32 to vector<1x128xi32>
    %248 = arith.cmpi eq, %1, %247 : vector<1x128xi32>
    %cst_79 = arith.constant -1.000000e+29 : f32
    %249 = arith.cmpf ogt, %238, %cst_79 : f32
    %250 = vector.broadcast %249 : i1 to vector<1x128xi1>
    %251 = arith.andi %248, %250 : vector<1x128xi1>
    %cst_80 = arith.constant 1.000000e+00 : f32
    %252 = vector.broadcast %cst_80 : f32 to vector<1x128xf32>
    %253 = arith.select %251, %252, %225 : vector<1x128xi1>, vector<1x128xf32>
    %cst_81 = arith.constant -1.000000e+30 : f32
    %254 = vector.broadcast %cst_81 : f32 to vector<1x128xf32>
    %255 = arith.select %251, %254, %234 : vector<1x128xi1>, vector<1x128xf32>
    %256 = vector.shape_cast %255 : vector<1x128xf32> to vector<1x1x128xf32>
    %cst_82 = arith.constant dense<0xFF800000> : vector<1xf32>
    %257 = vector.multi_reduction <maximumf>, %256, %cst_82 [1, 2] : vector<1x1x128xf32> to vector<1xf32>
    %258 = vector.shape_cast %257 : vector<1xf32> to vector<1x1x1xf32>
    %259 = vector.extract %258[0, 0, 0] : f32 from vector<1x1x1xf32>
    %260 = vector.broadcast %259 : f32 to vector<1x128xf32>
    %261 = arith.cmpf oge, %255, %260 : vector<1x128xf32>
    %c128_i32_83 = arith.constant 128 : i32
    %262 = vector.broadcast %c128_i32_83 : i32 to vector<1x128xi32>
    %263 = arith.select %261, %1, %262 : vector<1x128xi1>, vector<1x128xi32>
    %264 = vector.shape_cast %263 : vector<1x128xi32> to vector<1x1x128xi32>
    %cst_84 = arith.constant dense<2147483647> : vector<1xi32>
    %265 = vector.multi_reduction <minsi>, %264, %cst_84 [1, 2] : vector<1x1x128xi32> to vector<1xi32>
    %266 = vector.shape_cast %265 : vector<1xi32> to vector<1x1x1xi32>
    %267 = vector.extract %266[0, 0, 0] : i32 from vector<1x1x1xi32>
    %268 = vector.broadcast %267 : i32 to vector<1x128xi32>
    %269 = arith.cmpi eq, %1, %268 : vector<1x128xi32>
    %cst_85 = arith.constant -1.000000e+29 : f32
    %270 = arith.cmpf ogt, %259, %cst_85 : f32
    %271 = vector.broadcast %270 : i1 to vector<1x128xi1>
    %272 = arith.andi %269, %271 : vector<1x128xi1>
    %cst_86 = arith.constant 1.000000e+00 : f32
    %273 = vector.broadcast %cst_86 : f32 to vector<1x128xf32>
    %274 = arith.select %272, %273, %253 : vector<1x128xi1>, vector<1x128xf32>
    %cst_87 = arith.constant -1.000000e+30 : f32
    %275 = vector.broadcast %cst_87 : f32 to vector<1x128xf32>
    %276 = arith.select %272, %275, %255 : vector<1x128xi1>, vector<1x128xf32>
    %277 = vector.shape_cast %276 : vector<1x128xf32> to vector<1x1x128xf32>
    %cst_88 = arith.constant dense<0xFF800000> : vector<1xf32>
    %278 = vector.multi_reduction <maximumf>, %277, %cst_88 [1, 2] : vector<1x1x128xf32> to vector<1xf32>
    %279 = vector.shape_cast %278 : vector<1xf32> to vector<1x1x1xf32>
    %280 = vector.extract %279[0, 0, 0] : f32 from vector<1x1x1xf32>
    %281 = vector.broadcast %280 : f32 to vector<1x128xf32>
    %282 = arith.cmpf oge, %276, %281 : vector<1x128xf32>
    %c128_i32_89 = arith.constant 128 : i32
    %283 = vector.broadcast %c128_i32_89 : i32 to vector<1x128xi32>
    %284 = arith.select %282, %1, %283 : vector<1x128xi1>, vector<1x128xi32>
    %285 = vector.shape_cast %284 : vector<1x128xi32> to vector<1x1x128xi32>
    %cst_90 = arith.constant dense<2147483647> : vector<1xi32>
    %286 = vector.multi_reduction <minsi>, %285, %cst_90 [1, 2] : vector<1x1x128xi32> to vector<1xi32>
    %287 = vector.shape_cast %286 : vector<1xi32> to vector<1x1x1xi32>
    %288 = vector.extract %287[0, 0, 0] : i32 from vector<1x1x1xi32>
    %289 = vector.broadcast %288 : i32 to vector<1x128xi32>
    %290 = arith.cmpi eq, %1, %289 : vector<1x128xi32>
    %cst_91 = arith.constant -1.000000e+29 : f32
    %291 = arith.cmpf ogt, %280, %cst_91 : f32
    %292 = vector.broadcast %291 : i1 to vector<1x128xi1>
    %293 = arith.andi %290, %292 : vector<1x128xi1>
    %cst_92 = arith.constant 1.000000e+00 : f32
    %294 = vector.broadcast %cst_92 : f32 to vector<1x128xf32>
    %295 = arith.select %293, %294, %274 : vector<1x128xi1>, vector<1x128xf32>
    %296 = tpu.concatenate %130, %295 in 0 : vector<1x128xf32>, vector<1x128xf32> -> vector<2x128xf32>
    %c0_93 = arith.constant 0 : index
    %c0_94 = arith.constant 0 : index
    %297 = vector.load %arg4[%c0_93, %c0_94] : memref<2x128xf32, #tpu.memory_space<vmem>>, vector<2x128xf32>
    tpu.vector_store %arg4[%c0_93, %c0_94], %296 {strides = array<i32>} : memref<2x128xf32, #tpu.memory_space<vmem>>, vector<2x128xf32>,
    return
  }
}

</mosaic_0001>

<llo_original>
// kernel: _fused_sample.1
$region0: #{_fused_sample.1}
  #allocation0 [shape = 'u32[]', space=smem, size = 0x4, offset = 0x4, fixed_abs, tag = 'smem constant byte address 0x4 - core index']
  #allocation1 [shape = 'u32[144,128]{1,0:T(1,128)}', space=vmem, size = 0x12000, scoped, tag = 'internal scratch']
  %s0 = inlined_call_operand.hbm [shape: f32[128,128], index: 0, kind: input, shape index: {}]
  %s1 = inlined_call_operand.vmem [shape: f32[1,128], index: 1, kind: input, shape index: {}]
  %s2 = inlined_call_operand.hbm [shape: f32[1,128], index: 2, kind: input, shape index: {}]
  %s3 = inlined_call_operand.vmem [shape: f32[2,128], index: 3, kind: input, shape index: {}]
  %s4 = inlined_call_operand.hbm [shape: f32[2,128], index: 4, kind: output, shape index: {}]
  %s5 = sld [smem:[#allocation0]]
  $region34: #{_fused_sample.1} parent=0
    _
  %s7 = ssub.s32 1, %s5
  %s8 = scalar_select 0, %s7, %s5
  $region1: #{_fused_sample.1} parent=0
    #allocation2 [shape = 'u8[65536]{0}', space=vmem, size = 0x10000, scoped, tag = 'input window, operand 0, single buffered']
    #allocation3 [shape = 's32[1]{0}', space=sflag, size = 0x4, scoped, tag = 'scoped memory for _fused_sample.1']
    #allocation4 [shape = 's32[1]{0}', space=sflag, size = 0x4, scoped, tag = 'scoped memory for _fused_sample.1']
    #allocation5 [shape = 'u8[512]{0}', space=vmem, size = 0x400, scoped, tag = 'input window, operand 2, single buffered']
    #allocation6 [shape = 's32[1]{0}', space=sflag, size = 0x4, scoped, tag = 'scoped memory for _fused_sample.1']
    #allocation7 [shape = 'u8[1024]{0}', space=vmem, size = 0x400, scoped, tag = 'output window, operand 0, single buffered']
    %9 = vsyncpa [#allocation3], 0
    %10 = vsyncpa [#allocation6], 0
    %11 = vsyncpa [#allocation4], 0
    // Predicated region
    $region2: #{_fused_sample.1} parent=1 // pred_check
      _
    $region3: #{_fused_sample.1} parent=1 // pred_check_branch
      %13 = sbr.rel (0) target = $region5
    $region4: #{_fused_sample.1} parent=1 // pred_region
      %s15 = ssub.s32 2048, 2048
      %16 = vsyncadd [#allocation3], %s15
      %s17 = sshll.u32 [#allocation2], 4
      %s18 = int_to_ptr.vmem [resolvable:$true] %s17
      %23 = dma.hbm_to_vmem [thread:$0]  %s0, 2048, %s18, [#allocation3], 128, 128, 8
    $region5: #{_fused_sample.1} parent=1 // pred_fallthru
      _
    // Predicated region
    $region6: #{_fused_sample.1} parent=1 // pred_check
      _
    $region7: #{_fused_sample.1} parent=1 // pred_check_branch
      %25 = sbr.rel (0) target = $region9
    $region8: #{_fused_sample.1} parent=1 // pred_region
      _
    $region9: #{_fused_sample.1} parent=1 // pred_fallthru
      _
    // Predicated region
    $region10: #{_fused_sample.1} parent=1 // pred_check
      _
    $region11: #{_fused_sample.1} parent=1 // pred_check_branch
      %27 = sbr.rel (0) target = $region13
    $region12: #{_fused_sample.1} parent=1 // pred_region
      %s29 = ssub.s32 16, 16
      %30 = vsyncadd [#allocation6], %s29
      %s32 = sshll.u32 [#allocation5], 4
      %s33 = int_to_ptr.vmem [resolvable:$true] %s32
      %35 = dma.hbm_to_vmem [thread:$0]  %s2, 16, %s33, [#allocation6]
    $region13: #{_fused_sample.1} parent=1 // pred_fallthru
      _
    // Predicated region
    $region14: #{_fused_sample.1} parent=1 // pred_check
      _
    $region15: #{_fused_sample.1} parent=1 // pred_check_branch
      %37 = sbr.rel (0) target = $region17
    $region16: #{_fused_sample.1} parent=1 // pred_region
      _
    $region17: #{_fused_sample.1} parent=1 // pred_fallthru
      _
    // Predicated region
    $region18: #{_fused_sample.1} parent=1 // pred_check
      _
    $region19: #{_fused_sample.1} parent=1 // pred_check_branch
      %39 = sbr.rel (0) target = $region21
    $region20: #{_fused_sample.1} parent=1 // pred_region
      %40 = dma.done [#allocation3], 2048
    $region21: #{_fused_sample.1} parent=1 // pred_fallthru
      _
    // Predicated region
    $region22: #{_fused_sample.1} parent=1 // pred_check
      _
    $region23: #{_fused_sample.1} parent=1 // pred_check_branch
      %42 = sbr.rel (0) target = $region25
    $region24: #{_fused_sample.1} parent=1 // pred_region
      %43 = dma.done [#allocation6], 16
    $region25: #{_fused_sample.1} parent=1 // pred_fallthru
      _
    %v44 = vld [vmem:[#allocation2] sm:$0xff]
    %v45 = vld [vmem:[#allocation2 + $0x8] sm:$0xff]
    %v46 = vld [vmem:[#allocation2 + $0x10] sm:$0xff]
    %v47 = vld [vmem:[#allocation2 + $0x18] sm:$0xff]
    %v48 = vld [vmem:[#allocation2 + $0x20] sm:$0xff]
    %v49 = vld [vmem:[#allocation2 + $0x28] sm:$0xff]
    %v50 = vld [vmem:[#allocation2 + $0x30] sm:$0xff]
    %v51 = vld [vmem:[#allocation2 + $0x38] sm:$0xff]
    %v52 = vld [vmem:[#allocation2 + $0x40] sm:$0xff]
    %v53 = vld [vmem:[#allocation2 + $0x48] sm:$0xff]
    %v54 = vld [vmem:[#allocation2 + $0x50] sm:$0xff]
    %v55 = vld [vmem:[#allocation2 + $0x58] sm:$0xff]
    %v56 = vld [vmem:[#allocation2 + $0x60] sm:$0xff]
    %v57 = vld [vmem:[#allocation2 + $0x68] sm:$0xff]
    %v58 = vld [vmem:[#allocation2 + $0x70] sm:$0xff]
    %v59 = vld [vmem:[#allocation2 + $0x78] sm:$0xff]
    %v60 = vlaneseq
    %v61 = vand.u32 %v60, 127
    %v62 = vadd.f32 %v44, %v45
    %v63 = vadd.f32 %v62, %v46
    %v64 = vadd.f32 %v63, %v47
    %v65 = vadd.f32 %v64, %v48
    %v66 = vadd.f32 %v65, %v49
    %v67 = vadd.f32 %v66, %v50
    %v68 = vadd.f32 %v67, %v51
    %v69 = vadd.f32 %v68, %v52
    %v70 = vadd.f32 %v69, %v53
    %v71 = vadd.f32 %v70, %v54
    %v72 = vadd.f32 %v71, %v55
    %v73 = vadd.f32 %v72, %v56
    %v74 = vadd.f32 %v73, %v57
    %v75 = vadd.f32 %v74, %v58
    %v76 = vadd.f32 %v75, %v59
    %v77 = vrot.slane %v76, 4
    %v78 = vadd.f32 %v76, %v77
    %v79 = vrot.slane %v78, 2
    %v80 = vadd.f32 %v78, %v79
    %v81 = vrot.slane %v80, 1
    %v82 = vadd.f32 %v80, %v81
    %vm83 = vcmask 1040384
    %v84 = vsel %vm83, %v82, 0.0
    %85 = vadd.xlane.f32.xlu0 %v84
    %v86 = vpop.xlane.xlu0 %85
    %v87 = vrot.slane %v86, 4
    %v88 = vadd.f32 %v86, %v87
    %v89 = vrot.slane %v88, 2
    %v90 = vadd.f32 %v88, %v89
    %v91 = vrot.slane %v90, 1
    %v92 = vadd.f32 %v90, %v91
    %s93 = vtos %v92
    %p94 = scmp.gt.f32.partialorder %s93, 0.0
    %s95 = scalar_select %p94, %s93, 1.0
    %v96 = vstv %s95
    %v97 = vrcp.pop %v96
    %v98 = vmul.f32 %v82, %v97
    %vm99 = vcmp.gt.f32.partialorder %v98, 0.0
    %v100 = vsel %vm99, %v98, 1.0
    %v101 = vlog2.pop %v100
    %v102 = vmul.f32 %v101, 0.6931472
    %v103 = vsel %vm99, %v102, -1e+30
    %v104 = vld [vmem:[%s1] sm:$0x1]
    %vm105 = vcmp.gt.f32.partialorder %v104, 0.0
    %v106 = vld [vmem:[#allocation5] sm:$0x1]
    %v107 = vsel %vm105, %v106, -1e+30
    %v108 = vsel %vm83, %v107, -inf
    %109 = vmax.xlane.f32.xlu0 %v108
    %v110 = vpop.xlane.xlu0 %109
    %v111 = vrot.slane %v110, 4
    %v112 = vmax.f32 %v110, %v111
    %v113 = vrot.slane %v112, 2
    %v114 = vmax.f32 %v112, %v113
    %v115 = vrot.slane %v114, 1
    %v116 = vmax.f32 %v114, %v115
    %s117 = vtos %v116
    %v118 = vstv %s117
    %vm119 = vcmp.ge.f32.partialorder %v107, %v118
    %v120 = vsel %vm119, %v61, 128
    %v121 = vsel %vm83, %v120, 2147483647
    %v122 = vand.u32 %v121, 65535
    %v123 = vshra.s32 %v121, 16
    %v124 = vcvt.s32.f32 %v122
    %v125 = vcvt.s32.f32 %v123
    %126 = vmin.xlane.f32.xlu0 %v125
    %v127 = vpop.xlane.xlu0 %126
    %vm128 = vcmp.eq.f32.partialorder %v125, %v127
    %v129 = vsel %vm128, %v124, inf
    %130 = vmin.xlane.f32.xlu0 %v129
    %v131 = vpop.xlane.xlu0 %130
    %v132 = vcvt.f32.s32 %v131
    %v133 = vcvt.f32.s32 %v127
    %v134 = vshll.u32 %v133, 16
    %v135 = vadd.s32 %v134, %v132
    %v136 = vrot.slane %v135, 4
    %vm137 = vcmp.lt.s32.totalorder %v135, %v136
    %v138 = vsel %vm137, %v135, %v136
    %v139 = vrot.slane %v138, 2
    %vm140 = vcmp.lt.s32.totalorder %v138, %v139
    %v141 = vsel %vm140, %v138, %v139
    %v142 = vrot.slane %v141, 1
    %vm143 = vcmp.lt.s32.totalorder %v141, %v142
    %v144 = vsel %vm143, %v141, %v142
    %s145 = vtos %v144
    %v146 = vstv %s145
    %vm147 = vcmp.eq.s32.totalorder %v61, %v146
    %p148 = scmp.gt.f32.partialorder %s117, -1e+29
    %s149 = scalar_select %p148, 1, 0
    %v150 = vstv %s149
    %vm151 = vcmp.eq.s32.totalorder %v150, 1
    %vm152 = vmand %vm147, %vm151
    %v153 = vsel %vm152, 1.0, 0.0
    %v154 = vsel %vm152, -1e+30, %v107
    %v155 = vsel %vm83, %v154, -inf
    %156 = vmax.xlane.f32.xlu0 %v155
    %v157 = vpop.xlane.xlu0 %156
    %v158 = vrot.slane %v157, 4
    %v159 = vmax.f32 %v157, %v158
    %v160 = vrot.slane %v159, 2
    %v161 = vmax.f32 %v159, %v160
    %v162 = vrot.slane %v161, 1
    %v163 = vmax.f32 %v161, %v162
    %s164 = vtos %v163
    %v165 = vstv %s164
    %vm166 = vcmp.ge.f32.partialorder %v154, %v165
    %v167 = vsel %vm166, %v61, 128
    %v168 = vsel %vm83, %v167, 2147483647
    %v169 = vand.u32 %v168, 65535
    %v170 = vshra.s32 %v168, 16
    %v171 = vcvt.s32.f32 %v169
    %v172 = vcvt.s32.f32 %v170
    %173 = vmin.xlane.f32.xlu0 %v172
    %v174 = vpop.xlane.xlu0 %173
    %vm175 = vcmp.eq.f32.partialorder %v172, %v174
    %v176 = vsel %vm175, %v171, inf
    %177 = vmin.xlane.f32.xlu0 %v176
    %v178 = vpop.xlane.xlu0 %177
    %v179 = vcvt.f32.s32 %v178
    %v180 = vcvt.f32.s32 %v174
    %v181 = vshll.u32 %v180, 16
    %v182 = vadd.s32 %v181, %v179
    %v183 = vrot.slane %v182, 4
    %vm184 = vcmp.lt.s32.totalorder %v182, %v183
    %v185 = vsel %vm184, %v182, %v183
    %v186 = vrot.slane %v185, 2
    %vm187 = vcmp.lt.s32.totalorder %v185, %v186
    %v188 = vsel %vm187, %v185, %v186
    %v189 = vrot.slane %v188, 1
    %vm190 = vcmp.lt.s32.totalorder %v188, %v189
    %v191 = vsel %vm190, %v188, %v189
    %s192 = vtos %v191
    %v193 = vstv %s192
    %vm194 = vcmp.eq.s32.totalorder %v61, %v193
    %p195 = scmp.gt.f32.partialorder %s164, -1e+29
    %s196 = scalar_select %p195, 1, 0
    %v197 = vstv %s196
    %vm198 = vcmp.eq.s32.totalorder %v197, 1
    %vm199 = vmand %vm194, %vm198
    %v200 = vsel %vm199, 1.0, %v153
    %v201 = vsel %vm199, -1e+30, %v154
    %v202 = vsel %vm83, %v201, -inf
    %203 = vmax.xlane.f32.xlu0 %v202
    %v204 = vpop.xlane.xlu0 %203
    %v205 = vrot.slane %v204, 4
    %v206 = vmax.f32 %v204, %v205
    %v207 = vrot.slane %v206, 2
    %v208 = vmax.f32 %v206, %v207
    %v209 = vrot.slane %v208, 1
    %v210 = vmax.f32 %v208, %v209
    %s211 = vtos %v210
    %v212 = vstv %s211
    %vm213 = vcmp.ge.f32.partialorder %v201, %v212
    %v214 = vsel %vm213, %v61, 128
    %v215 = vsel %vm83, %v214, 2147483647
    %v216 = vand.u32 %v215, 65535
    %v217 = vshra.s32 %v215, 16
    %v218 = vcvt.s32.f32 %v216
    %v219 = vcvt.s32.f32 %v217
    %220 = vmin.xlane.f32.xlu0 %v219
    %v221 = vpop.xlane.xlu0 %220
    %vm222 = vcmp.eq.f32.partialorder %v219, %v221
    %v223 = vsel %vm222, %v218, inf
    %224 = vmin.xlane.f32.xlu0 %v223
    %v225 = vpop.xlane.xlu0 %224
    %v226 = vcvt.f32.s32 %v225
    %v227 = vcvt.f32.s32 %v221
    %v228 = vshll.u32 %v227, 16
    %v229 = vadd.s32 %v228, %v226
    %v230 = vrot.slane %v229, 4
    %vm231 = vcmp.lt.s32.totalorder %v229, %v230
    %v232 = vsel %vm231, %v229, %v230
    %v233 = vrot.slane %v232, 2
    %vm234 = vcmp.lt.s32.totalorder %v232, %v233
    %v235 = vsel %vm234, %v232, %v233
    %v236 = vrot.slane %v235, 1
    %vm237 = vcmp.lt.s32.totalorder %v235, %v236
    %v238 = vsel %vm237, %v235, %v236
    %s239 = vtos %v238
    %v240 = vstv %s239
    %vm241 = vcmp.eq.s32.totalorder %v61, %v240
    %p242 = scmp.gt.f32.partialorder %s211, -1e+29
    %s243 = scalar_select %p242, 1, 0
    %v244 = vstv %s243
    %vm245 = vcmp.eq.s32.totalorder %v244, 1
    %vm246 = vmand %vm241, %vm245
    %v247 = vsel %vm246, 1.0, %v200
    %v248 = vsel %vm246, -1e+30, %v201
    %v249 = vsel %vm83, %v248, -inf
    %250 = vmax.xlane.f32.xlu0 %v249
    %v251 = vpop.xlane.xlu0 %250
    %v252 = vrot.slane %v251, 4
    %v253 = vmax.f32 %v251, %v252
    %v254 = vrot.slane %v253, 2
    %v255 = vmax.f32 %v253, %v254
    %v256 = vrot.slane %v255, 1
    %v257 = vmax.f32 %v255, %v256
    %s258 = vtos %v257
    %v259 = vstv %s258
    %vm260 = vcmp.ge.f32.partialorder %v248, %v259
    %v261 = vsel %vm260, %v61, 128
    %v262 = vsel %vm83, %v261, 2147483647
    %v263 = vand.u32 %v262, 65535
    %v264 = vshra.s32 %v262, 16
    %v265 = vcvt.s32.f32 %v263
    %v266 = vcvt.s32.f32 %v264
    %267 = vmin.xlane.f32.xlu0 %v266
    %v268 = vpop.xlane.xlu0 %267
    %vm269 = vcmp.eq.f32.partialorder %v266, %v268
    %v270 = vsel %vm269, %v265, inf
    %271 = vmin.xlane.f32.xlu0 %v270
    %v272 = vpop.xlane.xlu0 %271
    %v273 = vcvt.f32.s32 %v272
    %v274 = vcvt.f32.s32 %v268
    %v275 = vshll.u32 %v274, 16
    %v276 = vadd.s32 %v275, %v273
    %v277 = vrot.slane %v276, 4
    %vm278 = vcmp.lt.s32.totalorder %v276, %v277
    %v279 = vsel %vm278, %v276, %v277
    %v280 = vrot.slane %v279, 2
    %vm281 = vcmp.lt.s32.totalorder %v279, %v280
    %v282 = vsel %vm281, %v279, %v280
    %v283 = vrot.slane %v282, 1
    %vm284 = vcmp.lt.s32.totalorder %v282, %v283
    %v285 = vsel %vm284, %v282, %v283
    %s286 = vtos %v285
    %v287 = vstv %s286
    %vm288 = vcmp.eq.s32.totalorder %v61, %v287
    %p289 = scmp.gt.f32.partialorder %s258, -1e+29
    %s290 = scalar_select %p289, 1, 0
    %v291 = vstv %s290
    %vm292 = vcmp.eq.s32.totalorder %v291, 1
    %vm293 = vmand %vm288, %vm292
    %v294 = vsel %vm293, 1.0, %v247
    %v295 = vsel %vm293, -1e+30, %v248
    %v296 = vsel %vm83, %v295, -inf
    %297 = vmax.xlane.f32.xlu0 %v296
    %v298 = vpop.xlane.xlu0 %297
    %v299 = vrot.slane %v298, 4
    %v300 = vmax.f32 %v298, %v299
    %v301 = vrot.slane %v300, 2
    %v302 = vmax.f32 %v300, %v301
    %v303 = vrot.slane %v302, 1
    %v304 = vmax.f32 %v302, %v303
    %s305 = vtos %v304
    %v306 = vstv %s305
    %vm307 = vcmp.ge.f32.partialorder %v295, %v306
    %v308 = vsel %vm307, %v61, 128
    %v309 = vsel %vm83, %v308, 2147483647
    %v310 = vand.u32 %v309, 65535
    %v311 = vshra.s32 %v309, 16
    %v312 = vcvt.s32.f32 %v310
    %v313 = vcvt.s32.f32 %v311
    %314 = vmin.xlane.f32.xlu0 %v313
    %v315 = vpop.xlane.xlu0 %314
    %vm316 = vcmp.eq.f32.partialorder %v313, %v315
    %v317 = vsel %vm316, %v312, inf
    %318 = vmin.xlane.f32.xlu0 %v317
    %v319 = vpop.xlane.xlu0 %318
    %v320 = vcvt.f32.s32 %v319
    %v321 = vcvt.f32.s32 %v315
    %v322 = vshll.u32 %v321, 16
    %v323 = vadd.s32 %v322, %v320
    %v324 = vrot.slane %v323, 4
    %vm325 = vcmp.lt.s32.totalorder %v323, %v324
    %v326 = vsel %vm325, %v323, %v324
    %v327 = vrot.slane %v326, 2
    %vm328 = vcmp.lt.s32.totalorder %v326, %v327
    %v329 = vsel %vm328, %v326, %v327
    %v330 = vrot.slane %v329, 1
    %vm331 = vcmp.lt.s32.totalorder %v329, %v330
    %v332 = vsel %vm331, %v329, %v330
    %s333 = vtos %v332
    %v334 = vstv %s333
    %vm335 = vcmp.eq.s32.totalorder %v61, %v334
    %p336 = scmp.gt.f32.partialorder %s305, -1e+29
    %s337 = scalar_select %p336, 1, 0
    %v338 = vstv %s337
    %vm339 = vcmp.eq.s32.totalorder %v338, 1
    %vm340 = vmand %vm335, %vm339
    %v341 = vsel %vm340, 1.0, %v294
    %342 = vmatprep.subr.mxu0 0.0
    %343 = vmatpush1.xpose.msra.mxu0 %v59
    %344 = vmatprep.subr.mxu0 0.0
    %345 = vmatpush1.xpose.msra.mxu0 %v58
    %346 = vmatprep.subr.mxu0 0.0
    %347 = vmatpush1.xpose.msra.mxu0 %v57
    %348 = vmatprep.subr.mxu0 0.0
    %349 = vmatpush1.xpose.msra.mxu0 %v56
    %350 = vmatprep.subr.mxu0 0.0
    %351 = vmatpush1.xpose.msra.mxu0 %v55
    %352 = vmatprep.subr.mxu0 0.0
    %353 = vmatpush1.xpose.msra.mxu0 %v54
    %354 = vmatprep.subr.mxu0 0.0
    %355 = vmatpush1.xpose.msra.mxu0 %v53
    %356 = vmatprep.subr.mxu0 0.0
    %357 = vmatpush1.xpose.msra.mxu0 %v52
    %358 = vmatprep.subr.mxu0 0.0
    %359 = vmatpush1.xpose.msra.mxu0 %v51
    %360 = vmatprep.subr.mxu0 0.0
    %361 = vmatpush1.xpose.msra.mxu0 %v50
    %362 = vmatprep.subr.mxu0 0.0
    %363 = vmatpush1.xpose.msra.mxu0 %v49
    %364 = vmatprep.subr.mxu0 0.0
    %365 = vmatpush1.xpose.msra.mxu0 %v48
    %366 = vmatprep.subr.mxu0 0.0
    %367 = vmatpush1.xpose.msra.mxu0 %v47
    %368 = vmatprep.subr.mxu0 0.0
    %369 = vmatpush1.xpose.msra.mxu0 %v46
    %370 = vmatprep.subr.mxu0 0.0
    %371 = vmatpush1.xpose.msra.mxu0 %v45
    %372 = vmatprep.subr.mxu0 0.0
    %373 = vmatpush1.xpose.msra.mxu0 %v44
    %374 = vmatprep.subr.mxu0 0.0
    %375 = vmatpush2.xpose.msra.mxu0 0.0
    %376 = vmatprep.subr.mxu0 0.0
    %377 = vmatpush2.xpose.msra.mxu0 0.0
    %378 = vmatprep.subr.mxu0 0.0
    %379 = vmatpush2.xpose.msra.mxu0 0.0
    %380 = vmatprep.subr.mxu0 0.0
    %381 = vmatpush2.xpose.msra.mxu0 0.0
    %382 = vmatprep.subr.mxu0 0.0
    %383 = vmatpush2.xpose.msra.mxu0 0.0
    %384 = vmatprep.subr.mxu0 0.0
    %385 = vmatpush2.xpose.msra.mxu0 0.0
    %386 = vmatprep.subr.mxu0 0.0
    %387 = vmatpush2.xpose.msra.mxu0 0.0
    %388 = vmatprep.subr.mxu0 0.0
    %389 = vmatpush2.xpose.msra.mxu0 0.0
    %390 = vmatprep.subr.mxu0 0.0
    %391 = vmatpush2.xpose.msra.mxu0 0.0
    %392 = vmatprep.subr.mxu0 0.0
    %393 = vmatpush2.xpose.msra.mxu0 0.0
    %394 = vmatprep.subr.mxu0 0.0
    %395 = vmatpush2.xpose.msra.mxu0 0.0
    %396 = vmatprep.subr.mxu0 0.0
    %397 = vmatpush2.xpose.msra.mxu0 0.0
    %398 = vmatprep.subr.mxu0 0.0
    %399 = vmatpush2.xpose.msra.mxu0 0.0
    %400 = vmatprep.subr.mxu0 0.0
    %401 = vmatpush2.xpose.msra.mxu0 0.0
    %402 = vmatprep.subr.mxu0 0.0
    %403 = vmatpush2.xpose.msra.mxu0 0.0
    %404 = vmatprep.subr.mxu0 0.0
    %405 = vmatpush2.xpose.msra.mxu0 0.0
    %406 = vmatprep.mubr.f32.mxu0 0.0
    %407 = vmatmul.mubr.f32.gmra.mxu0 %v341
    %v408 = vpop.f32.mrf.mxu0
    %v409 = vadd.f32 0.0, %v408
    %v410 = vpop.f32.mrf.mxu0
    %411 = vdwg.mxu0
    %vm412 = vcmp.gt.f32.partialorder %v409, 0.0
    %vm413 = vcmp.eq.f32.partialorder %v341, 0.0
    %vm414 = vmand %vm412, %vm413
    %v415 = vld [vmem:[%s3] sm:$0x1]
    %v416 = vadd.f32 %v103, %v415
    %v417 = vsel %vm414, %v416, -1e+30
    %v418 = vsel %vm83, %v417, -inf
    %419 = vmax.xlane.f32.xlu0 %v418
    %v420 = vpop.xlane.xlu0 %419
    %v421 = vrot.slane %v420, 4
    %v422 = vmax.f32 %v420, %v421
    %v423 = vrot.slane %v422, 2
    %v424 = vmax.f32 %v422, %v423
    %v425 = vrot.slane %v424, 1
    %v426 = vmax.f32 %v424, %v425
    %s427 = vtos %v426
    %v428 = vstv %s427
    %vm429 = vcmp.ge.f32.partialorder %v417, %v428
    %v430 = vsel %vm429, %v61, 128
    %v431 = vsel %vm83, %v430, 2147483647
    %v432 = vand.u32 %v431, 65535
    %v433 = vshra.s32 %v431, 16
    %v434 = vcvt.s32.f32 %v432
    %v435 = vcvt.s32.f32 %v433
    %436 = vmin.xlane.f32.xlu0 %v435
    %v437 = vpop.xlane.xlu0 %436
    %vm438 = vcmp.eq.f32.partialorder %v435, %v437
    %v439 = vsel %vm438, %v434, inf
    %440 = vmin.xlane.f32.xlu0 %v439
    %v441 = vpop.xlane.xlu0 %440
    %v442 = vcvt.f32.s32 %v441
    %v443 = vcvt.f32.s32 %v437
    %v444 = vshll.u32 %v443, 16
    %v445 = vadd.s32 %v444, %v442
    %v446 = vrot.slane %v445, 4
    %vm447 = vcmp.lt.s32.totalorder %v445, %v446
    %v448 = vsel %vm447, %v445, %v446
    %v449 = vrot.slane %v448, 2
    %vm450 = vcmp.lt.s32.totalorder %v448, %v449
    %v451 = vsel %vm450, %v448, %v449
    %v452 = vrot.slane %v451, 1
    %vm453 = vcmp.lt.s32.totalorder %v451, %v452
    %v454 = vsel %vm453, %v451, %v452
    %s455 = vtos %v454
    %v456 = vstv %s455
    %vm457 = vcmp.eq.s32.totalorder %v61, %v456
    %p458 = scmp.gt.f32.partialorder %s427, -1e+29
    %s459 = scalar_select %p458, 1, 0
    %v460 = vstv %s459
    %vm461 = vcmp.eq.s32.totalorder %v460, 1
    %vm462 = vmand %vm457, %vm461
    %v463 = vsel %vm462, 1.0, %v341
    %v464 = vsel %vm462, -1e+30, %v417
    %v465 = vsel %vm83, %v464, -inf
    %466 = vmax.xlane.f32.xlu0 %v465
    %v467 = vpop.xlane.xlu0 %466
    %v468 = vrot.slane %v467, 4
    %v469 = vmax.f32 %v467, %v468
    %v470 = vrot.slane %v469, 2
    %v471 = vmax.f32 %v469, %v470
    %v472 = vrot.slane %v471, 1
    %v473 = vmax.f32 %v471, %v472
    %s474 = vtos %v473
    %v475 = vstv %s474
    %vm476 = vcmp.ge.f32.partialorder %v464, %v475
    %v477 = vsel %vm476, %v61, 128
    %v478 = vsel %vm83, %v477, 2147483647
    %v479 = vand.u32 %v478, 65535
    %v480 = vshra.s32 %v478, 16
    %v481 = vcvt.s32.f32 %v479
    %v482 = vcvt.s32.f32 %v480
    %483 = vmin.xlane.f32.xlu0 %v482
    %v484 = vpop.xlane.xlu0 %483
    %vm485 = vcmp.eq.f32.partialorder %v482, %v484
    %v486 = vsel %vm485, %v481, inf
    %487 = vmin.xlane.f32.xlu0 %v486
    %v488 = vpop.xlane.xlu0 %487
    %v489 = vcvt.f32.s32 %v488
    %v490 = vcvt.f32.s32 %v484
    %v491 = vshll.u32 %v490, 16
    %v492 = vadd.s32 %v491, %v489
    %v493 = vrot.slane %v492, 4
    %vm494 = vcmp.lt.s32.totalorder %v492, %v493
    %v495 = vsel %vm494, %v492, %v493
    %v496 = vrot.slane %v495, 2
    %vm497 = vcmp.lt.s32.totalorder %v495, %v496
    %v498 = vsel %vm497, %v495, %v496
    %v499 = vrot.slane %v498, 1
    %vm500 = vcmp.lt.s32.totalorder %v498, %v499
    %v501 = vsel %vm500, %v498, %v499
    %s502 = vtos %v501
    %v503 = vstv %s502
    %vm504 = vcmp.eq.s32.totalorder %v61, %v503
    %p505 = scmp.gt.f32.partialorder %s474, -1e+29
    %s506 = scalar_select %p505, 1, 0
    %v507 = vstv %s506
    %vm508 = vcmp.eq.s32.totalorder %v507, 1
    %vm509 = vmand %vm504, %vm508
    %v510 = vsel %vm509, 1.0, %v463
    %v511 = vsel %vm509, -1e+30, %v464
    %v512 = vsel %vm83, %v511, -inf
    %513 = vmax.xlane.f32.xlu0 %v512
    %v514 = vpop.xlane.xlu0 %513
    %v515 = vrot.slane %v514, 4
    %v516 = vmax.f32 %v514, %v515
    %v517 = vrot.slane %v516, 2
    %v518 = vmax.f32 %v516, %v517
    %v519 = vrot.slane %v518, 1
    %v520 = vmax.f32 %v518, %v519
    %s521 = vtos %v520
    %v522 = vstv %s521
    %vm523 = vcmp.ge.f32.partialorder %v511, %v522
    %v524 = vsel %vm523, %v61, 128
    %v525 = vsel %vm83, %v524, 2147483647
    %v526 = vand.u32 %v525, 65535
    %v527 = vshra.s32 %v525, 16
    %v528 = vcvt.s32.f32 %v526
    %v529 = vcvt.s32.f32 %v527
    %530 = vmin.xlane.f32.xlu0 %v529
    %v531 = vpop.xlane.xlu0 %530
    %vm532 = vcmp.eq.f32.partialorder %v529, %v531
    %v533 = vsel %vm532, %v528, inf
    %534 = vmin.xlane.f32.xlu0 %v533
    %v535 = vpop.xlane.xlu0 %534
    %v536 = vcvt.f32.s32 %v535
    %v537 = vcvt.f32.s32 %v531
    %v538 = vshll.u32 %v537, 16
    %v539 = vadd.s32 %v538, %v536
    %v540 = vrot.slane %v539, 4
    %vm541 = vcmp.lt.s32.totalorder %v539, %v540
    %v542 = vsel %vm541, %v539, %v540
    %v543 = vrot.slane %v542, 2
    %vm544 = vcmp.lt.s32.totalorder %v542, %v543
    %v545 = vsel %vm544, %v542, %v543
    %v546 = vrot.slane %v545, 1
    %vm547 = vcmp.lt.s32.totalorder %v545, %v546
    %v548 = vsel %vm547, %v545, %v546
    %s549 = vtos %v548
    %v550 = vstv %s549
    %vm551 = vcmp.eq.s32.totalorder %v61, %v550
    %p552 = scmp.gt.f32.partialorder %s521, -1e+29
    %s553 = scalar_select %p552, 1, 0
    %v554 = vstv %s553
    %vm555 = vcmp.eq.s32.totalorder %v554, 1
    %vm556 = vmand %vm551, %vm555
    %v557 = vsel %vm556, 1.0, %v510
    %v558 = vsel %vm556, -1e+30, %v511
    %v559 = vsel %vm83, %v558, -inf
    %560 = vmax.xlane.f32.xlu0 %v559
    %v561 = vpop.xlane.xlu0 %560
    %v562 = vrot.slane %v561, 4
    %v563 = vmax.f32 %v561, %v562
    %v564 = vrot.slane %v563, 2
    %v565 = vmax.f32 %v563, %v564
    %v566 = vrot.slane %v565, 1
    %v567 = vmax.f32 %v565, %v566
    %s568 = vtos %v567
    %v569 = vstv %s568
    %vm570 = vcmp.ge.f32.partialorder %v558, %v569
    %v571 = vsel %vm570, %v61, 128
    %v572 = vsel %vm83, %v571, 2147483647
    %v573 = vand.u32 %v572, 65535
    %v574 = vshra.s32 %v572, 16
    %v575 = vcvt.s32.f32 %v573
    %v576 = vcvt.s32.f32 %v574
    %577 = vmin.xlane.f32.xlu0 %v576
    %v578 = vpop.xlane.xlu0 %577
    %vm579 = vcmp.eq.f32.partialorder %v576, %v578
    %v580 = vsel %vm579, %v575, inf
    %581 = vmin.xlane.f32.xlu0 %v580
    %v582 = vpop.xlane.xlu0 %581
    %v583 = vcvt.f32.s32 %v582
    %v584 = vcvt.f32.s32 %v578
    %v585 = vshll.u32 %v584, 16
    %v586 = vadd.s32 %v585, %v583
    %v587 = vrot.slane %v586, 4
    %vm588 = vcmp.lt.s32.totalorder %v586, %v587
    %v589 = vsel %vm588, %v586, %v587
    %v590 = vrot.slane %v589, 2
    %vm591 = vcmp.lt.s32.totalorder %v589, %v590
    %v592 = vsel %vm591, %v589, %v590
    %v593 = vrot.slane %v592, 1
    %vm594 = vcmp.lt.s32.totalorder %v592, %v593
    %v595 = vsel %vm594, %v592, %v593
    %s596 = vtos %v595
    %v597 = vstv %s596
    %vm598 = vcmp.eq.s32.totalorder %v61, %v597
    %p599 = scmp.gt.f32.partialorder %s568, -1e+29
    %s600 = scalar_select %p599, 1, 0
    %v601 = vstv %s600
    %vm602 = vcmp.eq.s32.totalorder %v601, 1
    %vm603 = vmand %vm598, %vm602
    %v604 = vsel %vm603, 1.0, %v557
    %vm605 = vcmp.eq.f32.partialorder %v604, 0.0
    %vm606 = vmand %vm412, %vm605
    %v607 = vld [vmem:[%s3 + $0x1] sm:$0x1]
    %v608 = vadd.f32 %v103, %v607
    %v609 = vsel %vm606, %v608, -1e+30
    %v610 = vsel %vm83, %v609, -inf
    %611 = vmax.xlane.f32.xlu0 %v610
    %v612 = vpop.xlane.xlu0 %611
    %v613 = vrot.slane %v612, 4
    %v614 = vmax.f32 %v612, %v613
    %v615 = vrot.slane %v614, 2
    %v616 = vmax.f32 %v614, %v615
    %v617 = vrot.slane %v616, 1
    %v618 = vmax.f32 %v616, %v617
    %s619 = vtos %v618
    %v620 = vstv %s619
    %vm621 = vcmp.ge.f32.partialorder %v609, %v620
    %v622 = vsel %vm621, %v61, 128
    %v623 = vsel %vm83, %v622, 2147483647
    %v624 = vand.u32 %v623, 65535
    %v625 = vshra.s32 %v623, 16
    %v626 = vcvt.s32.f32 %v624
    %v627 = vcvt.s32.f32 %v625
    %628 = vmin.xlane.f32.xlu0 %v627
    %v629 = vpop.xlane.xlu0 %628
    %vm630 = vcmp.eq.f32.partialorder %v627, %v629
    %v631 = vsel %vm630, %v626, inf
    %632 = vmin.xlane.f32.xlu0 %v631
    %v633 = vpop.xlane.xlu0 %632
    %v634 = vcvt.f32.s32 %v633
    %v635 = vcvt.f32.s32 %v629
    %v636 = vshll.u32 %v635, 16
    %v637 = vadd.s32 %v636, %v634
    %v638 = vrot.slane %v637, 4
    %vm639 = vcmp.lt.s32.totalorder %v637, %v638
    %v640 = vsel %vm639, %v637, %v638
    %v641 = vrot.slane %v640, 2
    %vm642 = vcmp.lt.s32.totalorder %v640, %v641
    %v643 = vsel %vm642, %v640, %v641
    %v644 = vrot.slane %v643, 1
    %vm645 = vcmp.lt.s32.totalorder %v643, %v644
    %v646 = vsel %vm645, %v643, %v644
    %s647 = vtos %v646
    %v648 = vstv %s647
    %vm649 = vcmp.eq.s32.totalorder %v61, %v648
    %p650 = scmp.gt.f32.partialorder %s619, -1e+29
    %s651 = scalar_select %p650, 1, 0
    %v652 = vstv %s651
    %vm653 = vcmp.eq.s32.totalorder %v652, 1
    %vm654 = vmand %vm649, %vm653
    %v655 = vsel %vm654, 1.0, %v604
    %v656 = vsel %vm654, -1e+30, %v609
    %v657 = vsel %vm83, %v656, -inf
    %658 = vmax.xlane.f32.xlu0 %v657
    %v659 = vpop.xlane.xlu0 %658
    %v660 = vrot.slane %v659, 4
    %v661 = vmax.f32 %v659, %v660
    %v662 = vrot.slane %v661, 2
    %v663 = vmax.f32 %v661, %v662
    %v664 = vrot.slane %v663, 1
    %v665 = vmax.f32 %v663, %v664
    %s666 = vtos %v665
    %v667 = vstv %s666
    %vm668 = vcmp.ge.f32.partialorder %v656, %v667
    %v669 = vsel %vm668, %v61, 128
    %v670 = vsel %vm83, %v669, 2147483647
    %v671 = vand.u32 %v670, 65535
    %v672 = vshra.s32 %v670, 16
    %v673 = vcvt.s32.f32 %v671
    %v674 = vcvt.s32.f32 %v672
    %675 = vmin.xlane.f32.xlu0 %v674
    %v676 = vpop.xlane.xlu0 %675
    %vm677 = vcmp.eq.f32.partialorder %v674, %v676
    %v678 = vsel %vm677, %v673, inf
    %679 = vmin.xlane.f32.xlu0 %v678
    %v680 = vpop.xlane.xlu0 %679
    %v681 = vcvt.f32.s32 %v680
    %v682 = vcvt.f32.s32 %v676
    %v683 = vshll.u32 %v682, 16
    %v684 = vadd.s32 %v683, %v681
    %v685 = vrot.slane %v684, 4
    %vm686 = vcmp.lt.s32.totalorder %v684, %v685
    %v687 = vsel %vm686, %v684, %v685
    %v688 = vrot.slane %v687, 2
    %vm689 = vcmp.lt.s32.totalorder %v687, %v688
    %v690 = vsel %vm689, %v687, %v688
    %v691 = vrot.slane %v690, 1
    %vm692 = vcmp.lt.s32.totalorder %v690, %v691
    %v693 = vsel %vm692, %v690, %v691
    %s694 = vtos %v693
    %v695 = vstv %s694
    %vm696 = vcmp.eq.s32.totalorder %v61, %v695
    %p697 = scmp.gt.f32.partialorder %s666, -1e+29
    %s698 = scalar_select %p697, 1, 0
    %v699 = vstv %s698
    %vm700 = vcmp.eq.s32.totalorder %v699, 1
    %vm701 = vmand %vm696, %vm700
    %v702 = vsel %vm701, 1.0, %v655
    %v703 = vsel %vm701, -1e+30, %v656
    %v704 = vsel %vm83, %v703, -inf
    %705 = vmax.xlane.f32.xlu0 %v704
    %v706 = vpop.xlane.xlu0 %705
    %v707 = vrot.slane %v706, 4
    %v708 = vmax.f32 %v706, %v707
    %v709 = vrot.slane %v708, 2
    %v710 = vmax.f32 %v708, %v709
    %v711 = vrot.slane %v710, 1
    %v712 = vmax.f32 %v710, %v711
    %s713 = vtos %v712
    %v714 = vstv %s713
    %vm715 = vcmp.ge.f32.partialorder %v703, %v714
    %v716 = vsel %vm715, %v61, 128
    %v717 = vsel %vm83, %v716, 2147483647
    %v718 = vand.u32 %v717, 65535
    %v719 = vshra.s32 %v717, 16
    %v720 = vcvt.s32.f32 %v718
    %v721 = vcvt.s32.f32 %v719
    %722 = vmin.xlane.f32.xlu0 %v721
    %v723 = vpop.xlane.xlu0 %722
    %vm724 = vcmp.eq.f32.partialorder %v721, %v723
    %v725 = vsel %vm724, %v720, inf
    %726 = vmin.xlane.f32.xlu0 %v725
    %v727 = vpop.xlane.xlu0 %726
    %v728 = vcvt.f32.s32 %v727
    %v729 = vcvt.f32.s32 %v723
    %v730 = vshll.u32 %v729, 16
    %v731 = vadd.s32 %v730, %v728
    %v732 = vrot.slane %v731, 4
    %vm733 = vcmp.lt.s32.totalorder %v731, %v732
    %v734 = vsel %vm733, %v731, %v732
    %v735 = vrot.slane %v734, 2
    %vm736 = vcmp.lt.s32.totalorder %v734, %v735
    %v737 = vsel %vm736, %v734, %v735
    %v738 = vrot.slane %v737, 1
    %vm739 = vcmp.lt.s32.totalorder %v737, %v738
    %v740 = vsel %vm739, %v737, %v738
    %s741 = vtos %v740
    %v742 = vstv %s741
    %vm743 = vcmp.eq.s32.totalorder %v61, %v742
    %p744 = scmp.gt.f32.partialorder %s713, -1e+29
    %s745 = scalar_select %p744, 1, 0
    %v746 = vstv %s745
    %vm747 = vcmp.eq.s32.totalorder %v746, 1
    %vm748 = vmand %vm743, %vm747
    %v749 = vsel %vm748, 1.0, %v702
    %v750 = vsel %vm83, %v341, %v749
    %751 = vst [vmem:[#allocation7] sm:$0x3] %v750
    // Predicated region
    $region26: #{_fused_sample.1} parent=1 // pred_check
      _
    $region27: #{_fused_sample.1} parent=1 // pred_check_branch
      %753 = sbr.rel (0) target = $region29
    $region28: #{_fused_sample.1} parent=1 // pred_region
      %s755 = ssub.s32 32, 32
      %756 = vsyncadd [#allocation4], %s755
      %s758 = sshll.u32 [#allocation7], 4
      %s759 = int_to_ptr.vmem [resolvable:$true] %s758
      %761 = dma.vmem_to_hbm [thread:$0]  %s759, 32, %s4, [#allocation4]
    $region29: #{_fused_sample.1} parent=1 // pred_fallthru
      _
    // Predicated region
    $region30: #{_fused_sample.1} parent=1 // pred_check
      _
    $region31: #{_fused_sample.1} parent=1 // pred_check_branch
      %763 = sbr.rel (0) target = $region33
    $region32: #{_fused_sample.1} parent=1 // pred_region
      %764 = dma.done [#allocation4], 32
    $region33: #{_fused_sample.1} parent=1 // pred_fallthru
      _
    %765 = vsyncpa [#allocation3], 1
    %766 = vsyncpa [#allocation6], 1
    %767 = vsyncpa [#allocation4], 1

</llo_original>
